<compile_context>
chip_gen: v7x
topology: tpu7x:2x2x1
jax: 0.10.0
libtpu: 0.0.40
codegen_flags: <defaults>
</compile_context>

<pallas_src>
import jax
import jax.numpy as jnp
from jax.experimental import pallas as pl
from jax.experimental.pallas import tpu as pltpu


def _round_up(x, m):
    return ((x + m - 1) // m) * m


def _cond_linear_decoder_kernel(xc_ref, z_ref, wz_ref, mb_ref, o_ref):
    """xc_ref: (block_b, 1) int32 VMEM (condition ids)
       z_ref:  (block_b, L)      VMEM
       wz_ref: (L, O_pad)        VMEM (resident weight slab)
       mb_ref: (C_pad, O_pad)    VMEM (resident table: emb @ We.T + bias)
       o_ref:  (block_b, O_pad)  VMEM"""
    # Main MXU pass, f32 accumulation.
    acc = jnp.dot(z_ref[...], wz_ref[...], preferred_element_type=jnp.float32)

    # Embedding/bias path as a one-hot matmul: VPU compare/cast + tiny MXU
    # pass. No per-row scalar reads, no masked sublane loads, no XLU concat.
    xc = xc_ref[...]                                        # (block_b, 1) int32
    block_b = xc.shape[0]
    c_pad = mb_ref.shape[0]
    iota = jax.lax.broadcasted_iota(jnp.int32, (block_b, c_pad), 1)
    onehot = (xc == iota).astype(mb_ref.dtype)              # (block_b, C_pad)
    add = jnp.dot(onehot, mb_ref[...], preferred_element_type=jnp.float32)

    o_ref[...] = (acc + add).astype(o_ref.dtype)


def prepare_decoder_params(emb_table, weight, bias, latent_dim,
                           *, compute_dtype=jnp.float32):
    """Fold PyTorch ConditionalLinearDecoder params into kernel-native layout.

    Do this ONCE when parameters are set / loaded (not per forward call): at
    production O x (L+E), the full-weight transpose is itself an HBM-bandwidth
    op comparable to the kernel's own traffic.
    """
    C, E = emb_table.shape
    O, in_features = weight.shape
    assert in_features == latent_dim + E, \
        "Linear in_features must equal latent_dim + condition_embed_dim"

    wt = weight.T                                       # (L+E, O) one transpose
    wz = wt[:latent_dim]                                # (L, O)
    mb = emb_table @ wt[latent_dim:] + bias[None, :]    # (C, O) folded emb+bias

    # Lane-dense output (pad O to 128) + sublane-aligned table (pad C to 8).
    o_pad = _round_up(O, 128)
    c_pad = _round_up(C, 8)
    wz = jnp.pad(wz, ((0, 0), (0, o_pad - O))).astype(compute_dtype)
    mb = jnp.pad(mb, ((0, c_pad - C), (0, o_pad - O))).astype(compute_dtype)
    return wz, mb, O


def conditional_linear_decoder(z, x_cond, wz, mb, output_dim, *, block_b=None):
    """z: (B, L), x_cond: (B,) int, wz: (L, O_pad), mb: (C_pad, O_pad)."""
    B, L = z.shape
    Lw, o_pad = wz.shape
    c_pad = mb.shape[0]
    assert Lw == L

    if block_b is None:
        # Largest tile that fits comfortably. At production sizes target >=512
        # rows per step (halve on v7x's smaller VMEM), and keep >=2 grid steps
        # (block_b <= B//2) so both v7x TensorCores get work.
        block_b = B if B <= 512 else 512
    assert B % block_b == 0 and (block_b % 8 == 0 or block_b == B)
    grid = (B // block_b,)

    x_cond_2d = x_cond.reshape(B, 1).astype(jnp.int32)

    cost = pl.CostEstimate(
        flops=2 * B * L * o_pad + 2 * B * c_pad * o_pad + B * o_pad,
        transcendentals=0,
        bytes_accessed=4 * (z.size + wz.size + mb.size + B + B * o_pad))

    out = pl.pallas_call(
        _cond_linear_decoder_kernel,
        out_shape=jax.ShapeDtypeStruct((B, o_pad), z.dtype),
        grid_spec=pltpu.PrefetchScalarGridSpec(
            num_scalar_prefetch=0,
            grid=grid,
            in_specs=[
                pl.BlockSpec((block_b, 1), lambda i: (i, 0)),     # condition ids
                pl.BlockSpec((block_b, L), lambda i: (i, 0)),     # z tile
                pl.BlockSpec((L, o_pad), lambda i: (0, 0)),       # Wz (resident)
                pl.BlockSpec((c_pad, o_pad), lambda i: (0, 0)),   # MB (resident)
            ],
            out_specs=pl.BlockSpec((block_b, o_pad), lambda i: (i, 0)),
        ),
        compiler_params=pltpu.CompilerParams(
            # Batch tiles are independent -> shard across TensorCores on v7x.
            dimension_semantics=("parallel",)),
        cost_estimate=cost,
    )(x_cond_2d, z, wz, mb)

    # Drop the lane padding.
    return out[:, :output_dim]


def _reference(z, x_cond, emb_table, weight, bias):
    emb = jnp.take(emb_table, x_cond, axis=0)
    h = jnp.concatenate([z, emb], axis=1)
    return h @ weight.T + bias


if __name__ == "__main__":
    # Small shapes consistent with the module's forward.
    batch = 8
    latent_dim = 32
    num_conditions = 4
    condition_embed_dim = num_conditions            # required by the original module
    output_dim = 32

    key = jax.random.PRNGKey(0)
    k_z, k_c, k_emb, k_w, k_b = jax.random.split(key, 5)

    z = jax.random.normal(k_z, (batch, latent_dim), dtype=jnp.float32)
    x_cond = jax.random.randint(k_c, (batch,), 0, num_conditions, dtype=jnp.int32)

    # Deterministic parameter init mirroring PyTorch defaults:
    # Embedding ~ N(0, 1); Linear weight/bias ~ U(-1/sqrt(fan_in), +1/sqrt(fan_in)).
    emb_table = jax.random.normal(
        k_emb, (num_conditions, condition_embed_dim), dtype=jnp.float32)
    fan_in = latent_dim + num_conditions
    bound = 1.0 / (fan_in ** 0.5)
    weight = jax.random.uniform(
        k_w, (output_dim, fan_in), minval=-bound, maxval=bound, dtype=jnp.float32)
    bias = jax.random.uniform(
        k_b, (output_dim,), minval=-bound, maxval=bound, dtype=jnp.float32)

    # Parameter folding done once (not per forward call).
    wz, mb, out_dim = prepare_decoder_params(emb_table, weight, bias, latent_dim)

    out = conditional_linear_decoder(z, x_cond, wz, mb, out_dim)
    out = jax.block_until_ready(out)

    ref = _reference(z, x_cond, emb_table, weight, bias)
    assert out.shape == (batch, output_dim)
    assert jnp.allclose(out, ref, atol=1e-5, rtol=1e-5)
    print("KERNEL_OK")
</pallas_src>

<mosaic_0001>
module attributes {stable_mosaic.version = 11 : i64} {
  func.func @_cond_linear_decoder_kernel(%arg0: i32, %arg1: memref<8x1xi32, #tpu.memory_space<vmem>>, %arg2: memref<8x32xf32, #tpu.memory_space<vmem>>, %arg3: memref<32x128xf32, #tpu.memory_space<vmem>>, %arg4: memref<8x128xf32, #tpu.memory_space<vmem>>, %arg5: memref<8x128xf32, #tpu.memory_space<vmem>>) attributes {dimension_semantics = [#tpu.dimension_semantics<parallel>], iteration_bounds = array<i64: 1>, scalar_prefetch = 0 : i64, scratch_operands = 0 : i64, tpu.core_type = #tpu.core_type<tc>, window_params = [{transform_indices = @transform_0, window_bounds = array<i64: 8, 1>}, {transform_indices = @transform_1, window_bounds = array<i64: 8, 32>}, {pipeline_mode = #tpu.pipeline_mode<synchronous>, transform_indices = @transform_2, window_bounds = array<i64: 32, 128>}, {pipeline_mode = #tpu.pipeline_mode<synchronous>, transform_indices = @transform_3, window_bounds = array<i64: 8, 128>}, {transform_indices = @transform_4, window_bounds = array<i64: 8, 128>}]} {
    %c0 = arith.constant 0 : index
    %c0_0 = arith.constant 0 : index
    %0 = vector.load %arg2[%c0, %c0_0] : memref<8x32xf32, #tpu.memory_space<vmem>>, vector<8x32xf32>
    %c0_1 = arith.constant 0 : index
    %c0_2 = arith.constant 0 : index
    %1 = vector.load %arg3[%c0_1, %c0_2] : memref<32x128xf32, #tpu.memory_space<vmem>>, vector<32x128xf32>
    %cst = arith.constant dense<0.000000e+00> : vector<8x128xf32>
    %2 = tpu.matmul %0, %1, %cst {dimension_numbers = #tpu.dot_dimension_numbers<[1], [0], [0], [1], [0, 0, 1, 1], [], []>} : vector<8x32xf32>, vector<32x128xf32>, vector<8x128xf32> -> vector<8x128xf32>
    %c0_3 = arith.constant 0 : index
    %c0_4 = arith.constant 0 : index
    %3 = vector.load %arg1[%c0_3, %c0_4] : memref<8x1xi32, #tpu.memory_space<vmem>>, vector<8x1xi32>
    %4 = tpu.iota {dimensions = array<i32: 1>} : vector<8x8xi32>
    %5 = vector.broadcast %3 : vector<8x1xi32> to vector<8x8xi32>
    %6 = arith.cmpi eq, %5, %4 : vector<8x8xi32>
    %7 = arith.extui %6 : vector<8x8xi1> to vector<8x8xi32>
    %8 = arith.sitofp %7 : vector<8x8xi32> to vector<8x8xf32>
    %c0_5 = arith.constant 0 : index
    %c0_6 = arith.constant 0 : index
    %9 = vector.load %arg4[%c0_5, %c0_6] : memref<8x128xf32, #tpu.memory_space<vmem>>, vector<8x128xf32>
    %cst_7 = arith.constant dense<0.000000e+00> : vector<8x128xf32>
    %10 = tpu.matmul %8, %9, %cst_7 {dimension_numbers = #tpu.dot_dimension_numbers<[1], [0], [0], [1], [0, 0, 1, 1], [], []>} : vector<8x8xf32>, vector<8x128xf32>, vector<8x128xf32> -> vector<8x128xf32>
    %11 = arith.addf %2, %10 : vector<8x128xf32>
    %c0_8 = arith.constant 0 : index
    %c0_9 = arith.constant 0 : index
    %12 = vector.load %arg5[%c0_8, %c0_9] : memref<8x128xf32, #tpu.memory_space<vmem>>, vector<8x128xf32>
    tpu.vector_store %arg5[%c0_8, %c0_9], %11 {strides = array<i32>} : memref<8x128xf32, #tpu.memory_space<vmem>>, vector<8x128xf32>,
    return
  }
  func.func @transform_0(%arg0: i32) -> (i32, i32) {
    %c0_i32 = arith.constant 0 : i32
    %c0_i32_0 = arith.constant 0 : i32
    return %arg0, %c0_i32 : i32, i32
  }
  func.func @transform_1(%arg0: i32) -> (i32, i32) {
    %c0_i32 = arith.constant 0 : i32
    %c0_i32_0 = arith.constant 0 : i32
    return %arg0, %c0_i32 : i32, i32
  }
  func.func @transform_2(%arg0: i32) -> (i32, i32) {
    %c0_i32 = arith.constant 0 : i32
    %c0_i32_0 = arith.constant 0 : i32
    %c0_i32_1 = arith.constant 0 : i32
    return %c0_i32, %c0_i32_0 : i32, i32
  }
  func.func @transform_3(%arg0: i32) -> (i32, i32) {
    %c0_i32 = arith.constant 0 : i32
    %c0_i32_0 = arith.constant 0 : i32
    %c0_i32_1 = arith.constant 0 : i32
    return %c0_i32, %c0_i32_0 : i32, i32
  }
  func.func @transform_4(%arg0: i32) -> (i32, i32) {
    %c0_i32 = arith.constant 0 : i32
    %c0_i32_0 = arith.constant 0 : i32
    return %arg0, %c0_i32 : i32, i32
  }
}

</mosaic_0001>

<llo_original>
// kernel: tpu_custom_call.1
$region0: #{tpu_custom_call.1}
  #allocation0 [shape = 'u32[]', space=smem, size = 0x4, offset = 0x4, fixed_abs, tag = 'smem constant byte address 0x4 - core index']
  #allocation1 [shape = 'u32[144,128]{1,0:T(1,128)}', space=vmem, size = 0x12000, scoped, tag = 'internal scratch']
  %s0 = inlined_call_operand.vmem [shape: s32[8,1], index: 0, kind: input, shape index: {}]
  %s1 = inlined_call_operand.vmem [shape: f32[8,32], index: 1, kind: input, shape index: {}]
  %s2 = inlined_call_operand.hbm [shape: f32[32,128], index: 2, kind: input, shape index: {}]
  %s3 = inlined_call_operand.vmem [shape: f32[8,128], index: 3, kind: input, shape index: {}]
  %s4 = inlined_call_operand.hbm [shape: f32[8,128], index: 4, kind: output, shape index: {}]
  %s5 = sld [smem:[#allocation0]]
  $region30: #{tpu_custom_call.1} parent=0
    _
  %s7 = ssub.s32 1, %s5
  %s8 = scalar_select 0, %s7, %s5
  $region1: #{tpu_custom_call.1} parent=0
    #allocation2 [shape = 'u8[16384]{0}', space=vmem, size = 0x4000, scoped, tag = 'input window, operand 2, single buffered']
    #allocation3 [shape = 's32[1]{0}', space=sflag, size = 0x4, scoped, tag = 'scoped memory for tpu_custom_call.1']
    #allocation4 [shape = 's32[1]{0}', space=sflag, size = 0x4, scoped, tag = 'scoped memory for tpu_custom_call.1']
    #allocation5 [shape = 'u8[4096]{0}', space=vmem, size = 0x1000, scoped, tag = 'output window, operand 0, single buffered']
    %9 = vsyncpa [#allocation3], 0
    %10 = vsyncpa [#allocation4], 0
    // Predicated region
    $region2: #{tpu_custom_call.1} parent=1 // pred_check
      _
    $region3: #{tpu_custom_call.1} parent=1 // pred_check_branch
      %12 = sbr.rel (0) target = $region5
    $region4: #{tpu_custom_call.1} parent=1 // pred_region
      _
    $region5: #{tpu_custom_call.1} parent=1 // pred_fallthru
      _
    // Predicated region
    $region6: #{tpu_custom_call.1} parent=1 // pred_check
      _
    $region7: #{tpu_custom_call.1} parent=1 // pred_check_branch
      %14 = sbr.rel (0) target = $region9
    $region8: #{tpu_custom_call.1} parent=1 // pred_region
      _
    $region9: #{tpu_custom_call.1} parent=1 // pred_fallthru
      _
    // Predicated region
    $region10: #{tpu_custom_call.1} parent=1 // pred_check
      _
    $region11: #{tpu_custom_call.1} parent=1 // pred_check_branch
      %16 = sbr.rel (0) target = $region13
    $region12: #{tpu_custom_call.1} parent=1 // pred_region
      %s18 = ssub.s32 512, 512
      %19 = vsyncadd [#allocation3], %s18
      %s20 = sshll.u32 [#allocation2], 4
      %s21 = int_to_ptr.vmem [resolvable:$true] %s20
      %26 = dma.hbm_to_vmem [thread:$0]  %s2, 512, %s21, [#allocation3], 128, 128, 8
    $region13: #{tpu_custom_call.1} parent=1 // pred_fallthru
      _
    // Predicated region
    $region14: #{tpu_custom_call.1} parent=1 // pred_check
      _
    $region15: #{tpu_custom_call.1} parent=1 // pred_check_branch
      %28 = sbr.rel (0) target = $region17
    $region16: #{tpu_custom_call.1} parent=1 // pred_region
      _
    $region17: #{tpu_custom_call.1} parent=1 // pred_fallthru
      _
    // Predicated region
    $region18: #{tpu_custom_call.1} parent=1 // pred_check
      _
    $region19: #{tpu_custom_call.1} parent=1 // pred_check_branch
      %30 = sbr.rel (0) target = $region21
    $region20: #{tpu_custom_call.1} parent=1 // pred_region
      %31 = dma.done [#allocation3], 512
    $region21: #{tpu_custom_call.1} parent=1 // pred_fallthru
      _
    %v32 = vld [vmem:[%s1] sm:$0xff]
    %v33 = vld [vmem:[#allocation2] sm:$0xff]
    %v34 = vld [vmem:[#allocation2 + $0x8] sm:$0xff]
    %v35 = vld [vmem:[#allocation2 + $0x10] sm:$0xff]
    %v36 = vld [vmem:[#allocation2 + $0x18] sm:$0xff]
    %v37 = vld [vmem:[%s0] sm:$0xff]
    %v38 = vlaneseq
    %v39 = vand.u32 %v38, 127
    %40 = vset.pattern.permute.xlu0 0
    %41 = vperm.xlu0 %40, %v37
    %v42 = vpop.permute.xlu0 %41
    %vm43 = vcmp.eq.s32.totalorder %v42, %v39
    %v44 = vsel %vm43, 1, 0
    %v45 = vcvt.s32.f32 %v44
    %v46 = vld [vmem:[%s3] sm:$0xff]
    %vm47 = vcmask 64512
    %v49 = vsel %vm47, %v45, 0
    %51 = vmatprep.subr.mxu0 0.0
    %52 = vmatpush1.msra.mxu0 %v46
    %53 = vmatprep.subr.mxu0 0.0
    %54 = vmatpush1.msra.mxu0 0.0
    %55 = vmatprep.subr.mxu0 0.0
    %56 = vmatpush1.msra.mxu0 0.0
    %57 = vmatprep.subr.mxu0 0.0
    %58 = vmatpush1.msra.mxu0 0.0
    %59 = vmatprep.subr.mxu0 0.0
    %60 = vmatpush1.msra.mxu0 0.0
    %61 = vmatprep.subr.mxu0 0.0
    %62 = vmatpush1.msra.mxu0 0.0
    %63 = vmatprep.subr.mxu0 0.0
    %64 = vmatpush1.msra.mxu0 0.0
    %65 = vmatprep.subr.mxu0 0.0
    %66 = vmatpush1.msra.mxu0 0.0
    %67 = vmatprep.subr.mxu0 0.0
    %68 = vmatpush1.msra.mxu0 0.0
    %69 = vmatprep.subr.mxu0 0.0
    %70 = vmatpush1.msra.mxu0 0.0
    %71 = vmatprep.subr.mxu0 0.0
    %72 = vmatpush1.msra.mxu0 0.0
    %73 = vmatprep.subr.mxu0 0.0
    %74 = vmatpush1.msra.mxu0 0.0
    %75 = vmatprep.subr.mxu0 0.0
    %76 = vmatpush1.msra.mxu0 0.0
    %77 = vmatprep.subr.mxu0 0.0
    %78 = vmatpush1.msra.mxu0 0.0
    %79 = vmatprep.subr.mxu0 0.0
    %80 = vmatpush1.msra.mxu0 0.0
    %81 = vmatprep.subr.mxu0 0.0
    %82 = vmatpush1.msra.mxu0 0.0
    %83 = vmatprep.subr.mxu0 0.0
    %84 = vmatpush1.msra.mxu0 0.0
    %85 = vmatprep.subr.mxu0 0.0
    %86 = vmatpush1.msra.mxu0 0.0
    %87 = vmatprep.subr.mxu0 0.0
    %88 = vmatpush1.msra.mxu0 0.0
    %89 = vmatprep.subr.mxu0 0.0
    %90 = vmatpush1.msra.mxu0 0.0
    %91 = vmatprep.subr.mxu0 0.0
    %92 = vmatpush1.msra.mxu0 0.0
    %93 = vmatprep.subr.mxu0 0.0
    %94 = vmatpush1.msra.mxu0 0.0
    %95 = vmatprep.subr.mxu0 0.0
    %96 = vmatpush1.msra.mxu0 0.0
    %97 = vmatprep.subr.mxu0 0.0
    %98 = vmatpush1.msra.mxu0 0.0
    %99 = vmatprep.subr.mxu0 0.0
    %100 = vmatpush1.msra.mxu0 0.0
    %101 = vmatprep.subr.mxu0 0.0
    %102 = vmatpush1.msra.mxu0 0.0
    %103 = vmatprep.subr.mxu0 0.0
    %104 = vmatpush1.msra.mxu0 0.0
    %105 = vmatprep.subr.mxu0 0.0
    %106 = vmatpush1.msra.mxu0 0.0
    %107 = vmatprep.subr.mxu0 0.0
    %108 = vmatpush1.msra.mxu0 0.0
    %109 = vmatprep.subr.mxu0 0.0
    %110 = vmatpush1.msra.mxu0 0.0
    %111 = vmatprep.subr.mxu0 0.0
    %112 = vmatpush1.msra.mxu0 0.0
    %113 = vmatprep.subr.mxu0 0.0
    %114 = vmatpush1.msra.mxu0 0.0
    %115 = vmatprep.mubr.f32.mxu0 0.0
    %116 = vmatmul.mubr.f32.gmra.mrb[0].mxu0 %v49
    %v117 = vpop.f32.mrb[0].mxu0
    %v118 = vadd.f32 0.0, %v117
    %v119 = vpop.f32.mrb[0].mxu0
    %120 = vdwg.mxu0
    %vm121 = vcmask 261120
    %v123 = vsel %vm121, %v32, 0
    %125 = vmatprep.subr.mxu0 0.0
    %126 = vmatpush1.msra.mxu0 %v33
    %127 = vmatprep.subr.mxu0 0.0
    %128 = vmatpush1.msra.mxu0 %v34
    %129 = vmatprep.subr.mxu0 0.0
    %130 = vmatpush1.msra.mxu0 %v35
    %131 = vmatprep.subr.mxu0 0.0
    %132 = vmatpush1.msra.mxu0 %v36
    %133 = vmatprep.subr.mxu0 0.0
    %134 = vmatpush1.msra.mxu0 0.0
    %135 = vmatprep.subr.mxu0 0.0
    %136 = vmatpush1.msra.mxu0 0.0
    %137 = vmatprep.subr.mxu0 0.0
    %138 = vmatpush1.msra.mxu0 0.0
    %139 = vmatprep.subr.mxu0 0.0
    %140 = vmatpush1.msra.mxu0 0.0
    %141 = vmatprep.subr.mxu0 0.0
    %142 = vmatpush1.msra.mxu0 0.0
    %143 = vmatprep.subr.mxu0 0.0
    %144 = vmatpush1.msra.mxu0 0.0
    %145 = vmatprep.subr.mxu0 0.0
    %146 = vmatpush1.msra.mxu0 0.0
    %147 = vmatprep.subr.mxu0 0.0
    %148 = vmatpush1.msra.mxu0 0.0
    %149 = vmatprep.subr.mxu0 0.0
    %150 = vmatpush1.msra.mxu0 0.0
    %151 = vmatprep.subr.mxu0 0.0
    %152 = vmatpush1.msra.mxu0 0.0
    %153 = vmatprep.subr.mxu0 0.0
    %154 = vmatpush1.msra.mxu0 0.0
    %155 = vmatprep.subr.mxu0 0.0
    %156 = vmatpush1.msra.mxu0 0.0
    %157 = vmatprep.subr.mxu0 0.0
    %158 = vmatpush1.msra.mxu0 0.0
    %159 = vmatprep.subr.mxu0 0.0
    %160 = vmatpush1.msra.mxu0 0.0
    %161 = vmatprep.subr.mxu0 0.0
    %162 = vmatpush1.msra.mxu0 0.0
    %163 = vmatprep.subr.mxu0 0.0
    %164 = vmatpush1.msra.mxu0 0.0
    %165 = vmatprep.subr.mxu0 0.0
    %166 = vmatpush1.msra.mxu0 0.0
    %167 = vmatprep.subr.mxu0 0.0
    %168 = vmatpush1.msra.mxu0 0.0
    %169 = vmatprep.subr.mxu0 0.0
    %170 = vmatpush1.msra.mxu0 0.0
    %171 = vmatprep.subr.mxu0 0.0
    %172 = vmatpush1.msra.mxu0 0.0
    %173 = vmatprep.subr.mxu0 0.0
    %174 = vmatpush1.msra.mxu0 0.0
    %175 = vmatprep.subr.mxu0 0.0
    %176 = vmatpush1.msra.mxu0 0.0
    %177 = vmatprep.subr.mxu0 0.0
    %178 = vmatpush1.msra.mxu0 0.0
    %179 = vmatprep.subr.mxu0 0.0
    %180 = vmatpush1.msra.mxu0 0.0
    %181 = vmatprep.subr.mxu0 0.0
    %182 = vmatpush1.msra.mxu0 0.0
    %183 = vmatprep.subr.mxu0 0.0
    %184 = vmatpush1.msra.mxu0 0.0
    %185 = vmatprep.subr.mxu0 0.0
    %186 = vmatpush1.msra.mxu0 0.0
    %187 = vmatprep.subr.mxu0 0.0
    %188 = vmatpush1.msra.mxu0 0.0
    %189 = vmatprep.mubr.f32.mxu0 0.0
    %190 = vmatmul.mubr.f32.gmra.mrb[0].mxu0 %v123
    %v191 = vpop.f32.mrb[0].mxu0
    %v192 = vadd.f32 %v118, %v191
    %v193 = vpop.f32.mrb[0].mxu0
    %194 = vdwg.mxu0
    %195 = vst [vmem:[#allocation5] sm:$0xff] %v192
    // Predicated region
    $region22: #{tpu_custom_call.1} parent=1 // pred_check
      _
    $region23: #{tpu_custom_call.1} parent=1 // pred_check_branch
      %197 = sbr.rel (0) target = $region25
    $region24: #{tpu_custom_call.1} parent=1 // pred_region
      %s199 = ssub.s32 128, 128
      %200 = vsyncadd [#allocation4], %s199
      %s202 = sshll.u32 [#allocation5], 4
      %s203 = int_to_ptr.vmem [resolvable:$true] %s202
      %205 = dma.vmem_to_hbm [thread:$0]  %s203, 128, %s4, [#allocation4]
    $region25: #{tpu_custom_call.1} parent=1 // pred_fallthru
      _
    // Predicated region
    $region26: #{tpu_custom_call.1} parent=1 // pred_check
      _
    $region27: #{tpu_custom_call.1} parent=1 // pred_check_branch
      %207 = sbr.rel (0) target = $region29
    $region28: #{tpu_custom_call.1} parent=1 // pred_region
      %208 = dma.done [#allocation4], 128
    $region29: #{tpu_custom_call.1} parent=1 // pred_fallthru
      _
    %209 = vsyncpa [#allocation3], 1
    %210 = vsyncpa [#allocation4], 1

</llo_original>
